<compile_context>
chip_gen: v7x
topology: tpu7x:2x2x1
jax: 0.10.0
libtpu: 0.0.40
codegen_flags: <defaults>
</compile_context>

<pallas_src>
import functools
import math

import jax
import jax.numpy as jnp
from jax.experimental import pallas as pl
from jax.experimental.pallas import tpu as pltpu


def _rmsnorm_kernel(x_ref, w_ref, o_ref, *, eps: float, inv_hidden: float):
    # x_ref: (TR, H), w_ref: (1, H), o_ref: (TR, H)
    xf = x_ref[...].astype(jnp.float32)
    # Sum-of-squares in f32 (XLU reduction), folded 1/hidden constant.
    ss = jnp.sum(xf * xf, axis=-1, keepdims=True)
    inv = jax.lax.rsqrt(ss * inv_hidden + eps)          # (TR, 1), EUP
    w = w_ref[...].astype(jnp.float32)                  # (1, H)
    # Re-read x_ref on the output path so the f32 tile used for the reduction
    # need not stay live across the store (loads are free in an HBM-bound kernel).
    o_ref[...] = (x_ref[...].astype(jnp.float32) * (inv * w)).astype(o_ref.dtype)


def _round_up(a: int, m: int) -> int:
    return ((a + m - 1) // m) * m


def _cdiv(a: int, b: int) -> int:
    return -(-a // b)


def rms_norm(x: jax.Array, weight: jax.Array, eps: float = 1e-6) -> jax.Array:
    """RMSNorm over the last dim of x, scaled by weight (shape: (hidden,))."""
    orig_shape = x.shape
    hidden = orig_shape[-1]
    assert weight.shape == (hidden,)
    rows = int(math.prod(orig_shape[:-1]))  # empty leading dims -> 1

    itemsize = jnp.dtype(x.dtype).itemsize
    # Sublane packing: 8 rows for 4-byte, 16 for 2-byte, 32 for 1-byte dtypes.
    packing = max(8, 32 // max(1, itemsize))
    # Lane-padded width, used only for VMEM costing (no data padding happens).
    hidden_pad = _round_up(hidden, 128)

    # --- Generation-aware VMEM budgeting --------------------------------------
    try:
        vmem_cap = int(pltpu.get_tpu_info().vmem_capacity_bytes)
    except Exception:
        vmem_cap = 64 * 1024 * 1024  # conservative fallback (v7x per-TC)
    vmem_limit = min((vmem_cap * 3) // 4, 96 * 1024 * 1024)  # 48 MiB on v7x

    # Per-row VMEM bytes: 2x double-buffered input + 2x double-buffered output
    # (native dtype) + one transient f32 tile.  Fixed headroom, no extra // 2.
    per_row_bytes = hidden_pad * (4 * itemsize + 4)
    budget = max(per_row_bytes * packing, vmem_limit - 8 * 1024 * 1024)

    rows_up = _round_up(rows, packing)
    tr_budget = max(packing, (budget // per_row_bytes) // packing * packing)
    # ~8 MiB block cap measured against the f32 working set.
    tr_cap = max(packing,
                 ((8 * 1024 * 1024) // (hidden_pad * 4)) // packing * packing)
    tr = min(tr_budget, tr_cap, rows_up)

    # Dual-TC (v7x) balance: prefer an even number of grid steps, but never
    # shrink a block below ~256 rows (per-step overhead on single-TC parts).
    MIN_SPLIT_ROWS = 256
    if tr >= rows_up:
        if rows_up >= 2 * MIN_SPLIT_ROWS:
            tr = _round_up(_cdiv(rows_up, 2), packing)
    else:
        g = _cdiv(rows, tr)
        if g % 2 == 1:
            tr2 = max(packing, _round_up(_cdiv(rows, g + 1), packing))
            if tr2 >= MIN_SPLIT_ROWS and _cdiv(rows, tr2) % 2 == 0:
                tr = tr2

    grid = (_cdiv(rows, tr),)

    x2d = x.reshape(rows, hidden)
    w2d = weight.reshape(1, hidden)

    cost = pl.CostEstimate(
        flops=3 * rows * hidden,
        transcendentals=rows,
        bytes_accessed=2 * rows * hidden * itemsize
        + hidden * jnp.dtype(weight.dtype).itemsize,
    )

    out = pl.pallas_call(
        functools.partial(_rmsnorm_kernel, eps=eps, inv_hidden=1.0 / hidden),
        out_shape=jax.ShapeDtypeStruct((rows, hidden), x.dtype),
        grid_spec=pltpu.PrefetchScalarGridSpec(
            num_scalar_prefetch=0,
            grid=grid,
            in_specs=[
                # x row tile; partial last block is masked by Pallas.
                pl.BlockSpec((tr, hidden), lambda i: (i, 0)),
                # weight: constant block index -> stays resident, no re-DMA.
                pl.BlockSpec((1, hidden), lambda i: (0, 0)),
            ],
            out_specs=pl.BlockSpec((tr, hidden), lambda i: (i, 0)),
        ),
        compiler_params=pltpu.CompilerParams(
            dimension_semantics=("parallel",),
            vmem_limit_bytes=vmem_limit,
        ),
        cost_estimate=cost,
    )(x2d, w2d)

    return out.reshape(orig_shape)


def _reference(x, w, eps):
    xf = x.astype(jnp.float32)
    y = xf * jax.lax.rsqrt(jnp.mean(xf * xf, axis=-1, keepdims=True) + eps)
    return (y * w.astype(jnp.float32)).astype(x.dtype)


if __name__ == "__main__":
    key = jax.random.PRNGKey(0)
    eps = 1e-6

    # Main case: batch=2, seq=8, hidden=128 (lane-aligned fast path).
    batch, seq, hidden = 2, 8, 128
    k0, k1 = jax.random.split(key)
    x = jax.random.normal(k0, (batch, seq, hidden), dtype=jnp.float32)
    weight = jnp.ones((hidden,), dtype=jnp.float32)  # matches torch.ones(dim)
    y = jax.block_until_ready(rms_norm(x, weight, eps))
    assert jnp.allclose(y, _reference(x, weight, eps), atol=1e-5, rtol=1e-5)

    # Ragged case: row count not a multiple of the tile, hidden not a multiple
    # of 128 — exercises the no-padding / partial-block path.
    x2 = jax.random.normal(k1, (3, 5, 96), dtype=jnp.float32)
    w2 = 1.0 + 0.01 * jnp.arange(96, dtype=jnp.float32)
    y2 = jax.block_until_ready(rms_norm(x2, w2, eps))
    assert jnp.allclose(y2, _reference(x2, w2, eps), atol=1e-5, rtol=1e-5)

    print("KERNEL_OK")
</pallas_src>

<mosaic_0001>
module attributes {stable_mosaic.version = 11 : i64} {
  func.func @_rmsnorm_kernel(%arg0: i32, %arg1: memref<16x128xf32, #tpu.memory_space<vmem>>, %arg2: memref<1x128xf32, #tpu.memory_space<vmem>>, %arg3: memref<16x128xf32, #tpu.memory_space<vmem>>) attributes {dimension_semantics = [#tpu.dimension_semantics<parallel>], iteration_bounds = array<i64: 1>, scalar_prefetch = 0 : i64, scratch_operands = 0 : i64, tpu.core_type = #tpu.core_type<tc>, window_params = [{transform_indices = @transform_0, window_bounds = array<i64: 16, 128>}, {pipeline_mode = #tpu.pipeline_mode<synchronous>, transform_indices = @transform_1, window_bounds = array<i64: 1, 128>}, {transform_indices = @transform_2, window_bounds = array<i64: 16, 128>}]} {
    %c0 = arith.constant 0 : index
    %c0_0 = arith.constant 0 : index
    %0 = vector.load %arg1[%c0, %c0_0] : memref<16x128xf32, #tpu.memory_space<vmem>>, vector<16x128xf32>
    %1 = arith.mulf %0, %0 : vector<16x128xf32>
    %cst = arith.constant dense<0.000000e+00> : vector<16xf32>
    %2 = vector.multi_reduction <add>, %1, %cst [1] : vector<16x128xf32> to vector<16xf32>
    %3 = vector.shape_cast %2 : vector<16xf32> to vector<16x1xf32>
    %cst_1 = arith.constant 7.812500e-03 : f32
    %4 = vector.broadcast %cst_1 : f32 to vector<16x1xf32>
    %5 = arith.mulf %3, %4 : vector<16x1xf32>
    %cst_2 = arith.constant 9.99999997E-7 : f32
    %6 = vector.broadcast %cst_2 : f32 to vector<16x1xf32>
    %7 = arith.addf %5, %6 : vector<16x1xf32>
    %8 = math.rsqrt %7 : vector<16x1xf32>
    %c0_3 = arith.constant 0 : index
    %c0_4 = arith.constant 0 : index
    %9 = vector.load %arg2[%c0_3, %c0_4] : memref<1x128xf32, #tpu.memory_space<vmem>>, vector<1x128xf32>
    %c0_5 = arith.constant 0 : index
    %c0_6 = arith.constant 0 : index
    %10 = vector.load %arg1[%c0_5, %c0_6] : memref<16x128xf32, #tpu.memory_space<vmem>>, vector<16x128xf32>
    %11 = vector.broadcast %8 : vector<16x1xf32> to vector<16x128xf32>
    %12 = vector.broadcast %9 : vector<1x128xf32> to vector<16x128xf32>
    %13 = arith.mulf %11, %12 : vector<16x128xf32>
    %14 = arith.mulf %10, %13 : vector<16x128xf32>
    %c0_7 = arith.constant 0 : index
    %c0_8 = arith.constant 0 : index
    %15 = vector.load %arg3[%c0_7, %c0_8] : memref<16x128xf32, #tpu.memory_space<vmem>>, vector<16x128xf32>
    tpu.vector_store %arg3[%c0_7, %c0_8], %14 {strides = array<i32>} : memref<16x128xf32, #tpu.memory_space<vmem>>, vector<16x128xf32>,
    return
  }
  func.func @transform_0(%arg0: i32) -> (i32, i32) {
    %c0_i32 = arith.constant 0 : i32
    %c0_i32_0 = arith.constant 0 : i32
    return %arg0, %c0_i32 : i32, i32
  }
  func.func @transform_1(%arg0: i32) -> (i32, i32) {
    %c0_i32 = arith.constant 0 : i32
    %c0_i32_0 = arith.constant 0 : i32
    %c0_i32_1 = arith.constant 0 : i32
    return %c0_i32, %c0_i32_0 : i32, i32
  }
  func.func @transform_2(%arg0: i32) -> (i32, i32) {
    %c0_i32 = arith.constant 0 : i32
    %c0_i32_0 = arith.constant 0 : i32
    return %arg0, %c0_i32 : i32, i32
  }
}

</mosaic_0001>

<llo_original>
// kernel: tpu_custom_call.1
$region0: #{tpu_custom_call.1}
  #allocation0 [shape = 'u32[]', space=smem, size = 0x4, offset = 0x4, fixed_abs, tag = 'smem constant byte address 0x4 - core index']
  #allocation1 [shape = 'u32[144,128]{1,0:T(1,128)}', space=vmem, size = 0x12000, scoped, tag = 'internal scratch']
  %s0 = inlined_call_operand.hbm [shape: f32[16,128], index: 0, kind: input, shape index: {}]
  %s1 = inlined_call_operand.vmem [shape: f32[1,128], index: 1, kind: input, shape index: {}]
  %s2 = inlined_call_operand.hbm [shape: f32[16,128], index: 2, kind: output, shape index: {}]
  %s3 = sld [smem:[#allocation0]]
  $region22: #{tpu_custom_call.1} parent=0
    _
  %s5 = ssub.s32 1, %s3
  %s6 = scalar_select 0, %s5, %s3
  $region1: #{tpu_custom_call.1} parent=0
    #allocation2 [shape = 'u8[8192]{0}', space=vmem, size = 0x2000, scoped, tag = 'input window, operand 0, single buffered']
    #allocation3 [shape = 's32[1]{0}', space=sflag, size = 0x4, scoped, tag = 'scoped memory for tpu_custom_call.1']
    #allocation4 [shape = 's32[1]{0}', space=sflag, size = 0x4, scoped, tag = 'scoped memory for tpu_custom_call.1']
    #allocation5 [shape = 'u8[8192]{0}', space=vmem, size = 0x2000, scoped, tag = 'output window, operand 0, single buffered']
    %7 = vsyncpa [#allocation3], 0
    %8 = vsyncpa [#allocation4], 0
    // Predicated region
    $region2: #{tpu_custom_call.1} parent=1 // pred_check
      _
    $region3: #{tpu_custom_call.1} parent=1 // pred_check_branch
      %10 = sbr.rel (0) target = $region5
    $region4: #{tpu_custom_call.1} parent=1 // pred_region
      %s12 = ssub.s32 256, 256
      %13 = vsyncadd [#allocation3], %s12
      %s14 = sshll.u32 [#allocation2], 4
      %s15 = int_to_ptr.vmem [resolvable:$true] %s14
      %20 = dma.hbm_to_vmem [thread:$0]  %s0, 256, %s15, [#allocation3], 128, 128, 8
    $region5: #{tpu_custom_call.1} parent=1 // pred_fallthru
      _
    // Predicated region
    $region6: #{tpu_custom_call.1} parent=1 // pred_check
      _
    $region7: #{tpu_custom_call.1} parent=1 // pred_check_branch
      %22 = sbr.rel (0) target = $region9
    $region8: #{tpu_custom_call.1} parent=1 // pred_region
      _
    $region9: #{tpu_custom_call.1} parent=1 // pred_fallthru
      _
    // Predicated region
    $region10: #{tpu_custom_call.1} parent=1 // pred_check
      _
    $region11: #{tpu_custom_call.1} parent=1 // pred_check_branch
      %24 = sbr.rel (0) target = $region13
    $region12: #{tpu_custom_call.1} parent=1 // pred_region
      %25 = dma.done [#allocation3], 256
    $region13: #{tpu_custom_call.1} parent=1 // pred_fallthru
      _
    %v26 = vld [vmem:[#allocation2] sm:$0xff]
    %v27 = vld [vmem:[#allocation2 + $0x8] sm:$0xff]
    %v28 = vmul.f32 %v26, %v26
    %v29 = vmul.f32 %v27, %v27
    %30 = vadd.xlane.f32.xlu0 %v28
    %v31 = vpop.xlane.xlu0 %30
    %32 = vadd.xlane.f32.xlu0 %v29
    %v33 = vpop.xlane.xlu0 %32
    %v34 = vmul.f32 %v31, 0.0078125
    %v35 = vmul.f32 %v33, 0.0078125
    %v36 = vadd.f32 %v34, 1e-06
    %v37 = vadd.f32 %v35, 1e-06
    %v38 = vrsqrt.pop %v36
    %v39 = vrsqrt.pop %v37
    %v40 = vld [vmem:[%s1] sm:$0x1]
    %v42 = vlaneseq
    %v43 = vshrl.u32 %v42, 7
    %v44 = vsub.s32 0, %v43
    %v45 = vrot.slane %v40, %v44
    %v47 = vmul.f32 %v38, %v45
    %v48 = vmul.f32 %v39, %v45
    %v49 = vmul.f32 %v26, %v47
    %v50 = vmul.f32 %v27, %v48
    %51 = vst [vmem:[#allocation5] sm:$0xff] %v49
    %52 = vst [vmem:[#allocation5 + $0x8] sm:$0xff] %v50
    // Predicated region
    $region14: #{tpu_custom_call.1} parent=1 // pred_check
      _
    $region15: #{tpu_custom_call.1} parent=1 // pred_check_branch
      %54 = sbr.rel (0) target = $region17
    $region16: #{tpu_custom_call.1} parent=1 // pred_region
      %s56 = ssub.s32 256, 256
      %57 = vsyncadd [#allocation4], %s56
      %s58 = sshll.u32 [#allocation5], 4
      %s59 = int_to_ptr.vmem [resolvable:$true] %s58
      %64 = dma.vmem_to_hbm [thread:$0]  %s59, 256, %s2, [#allocation4], 128, 128, 8
    $region17: #{tpu_custom_call.1} parent=1 // pred_fallthru
      _
    // Predicated region
    $region18: #{tpu_custom_call.1} parent=1 // pred_check
      _
    $region19: #{tpu_custom_call.1} parent=1 // pred_check_branch
      %66 = sbr.rel (0) target = $region21
    $region20: #{tpu_custom_call.1} parent=1 // pred_region
      %67 = dma.done [#allocation4], 256
    $region21: #{tpu_custom_call.1} parent=1 // pred_fallthru
      _
    %68 = vsyncpa [#allocation3], 1
    %69 = vsyncpa [#allocation4], 1

</llo_original>
